<compile_context>
chip_gen: v7x
topology: tpu7x:2x2x1
jax: 0.10.0
libtpu: 0.0.40
codegen_flags: <defaults>
</compile_context>

<pallas_src>
import math

import jax
import jax.numpy as jnp
from jax.experimental import pallas as pl
from jax.experimental.pallas import tpu as pltpu


def _round_up(x, m):
    return ((x + m - 1) // m) * m


# --------------------------------------------------------------------------- #
# Kernel
# --------------------------------------------------------------------------- #
def adaptive_head_kernel(xp_ref, xs_ref, w1_ref, w2_ref, b_ref, out_ref):
    # xp_ref : (TM, DP)       flattened patch activations
    # xs_ref : (TM, L, D)     sequence activations (mean over L done in-kernel)
    # w1_ref : (DP, T_pad)    pre-folded patch weight (fusion Linear folded in)
    # w2_ref : (D,  T_pad)    pre-folded sequence weight (fusion Linear folded in)
    # b_ref  : (1,  T_pad)    pre-folded bias (f32)
    # out_ref: (TM, T_pad)    lane-dense output slab
    L = xs_ref.shape[1]
    xs = xs_ref[...]

    # Sequence mean: unrolled VPU adds accumulated in f32 (essentially free in a
    # mem-bound regime); fall back to a single reduce for very long L.
    if L <= 32:
        xs_sum = xs[:, 0, :].astype(jnp.float32)
        for l in range(1, L):
            xs_sum = xs_sum + xs[:, l, :].astype(jnp.float32)
    else:
        xs_sum = jnp.sum(xs.astype(jnp.float32), axis=1)
    xs_mean = (xs_sum * (1.0 / L)).astype(w2_ref.dtype)

    acc = jnp.dot(xp_ref[...], w1_ref[...], preferred_element_type=jnp.float32)
    acc = acc + jnp.dot(xs_mean, w2_ref[...], preferred_element_type=jnp.float32)
    acc = acc + b_ref[...]
    out_ref[...] = acc.astype(out_ref.dtype)


# --------------------------------------------------------------------------- #
# One-time parameter fold
# --------------------------------------------------------------------------- #
def fold_params(params, *, d_model, patch_num, target_length,
                compute_dtype=jnp.float32):
    """Algebraic fold of the three Linears into a single affine map.
    All arithmetic done in f32; matmul weights are emitted in `compute_dtype`
    (use jnp.bfloat16 for the native bf16 MXU path + half the weight DMA)."""
    T = target_length
    DP = d_model * patch_num
    T_pad = _round_up(T, 128)

    wf_t = params["wf"].astype(jnp.float32).T          # (2T, T)
    wf1_t = wf_t[:T, :]                                 # patch half
    wf2_t = wf_t[T:, :]                                 # seq half

    w1 = params["wp"].astype(jnp.float32).T @ wf1_t     # (DP, T)
    w2 = params["ws"].astype(jnp.float32).T @ wf2_t     # (D,  T)
    b = (params["bp"].astype(jnp.float32) @ wf1_t
         + params["bs"].astype(jnp.float32) @ wf2_t
         + params["bf"].astype(jnp.float32))            # (T,)

    pad = T_pad - T                                      # lane-dense output dim
    w1_p = jnp.pad(w1, ((0, 0), (0, pad))).astype(compute_dtype)
    w2_p = jnp.pad(w2, ((0, 0), (0, pad))).astype(compute_dtype)
    b_p = jnp.pad(b, (0, pad)).reshape(1, T_pad).astype(jnp.float32)

    return {"w1": w1_p, "w2": w2_p, "b": b_p,
            "d_model": d_model, "patch_num": patch_num,
            "dp": DP, "t": T, "t_pad": T_pad}


# --------------------------------------------------------------------------- #
# Forward wrapper
# --------------------------------------------------------------------------- #
def adaptive_head_forward(x_patch, x_seq, folded, *, n_vars):
    """x_patch: (B*n_vars, patch_num, d_model), x_seq: (B*n_vars, L, d_model)."""
    M, patch_num, d_model = x_patch.shape
    assert M % n_vars == 0
    assert patch_num == folded["patch_num"] and d_model == folded["d_model"]
    batch_size = M // n_vars
    L = x_seq.shape[1]
    D = d_model
    DP = folded["dp"]
    T = folded["t"]
    T_pad = folded["t_pad"]
    assert x_seq.shape == (M, L, D)

    compute_dtype = folded["w1"].dtype
    out_dtype = x_patch.dtype

    # Match activation dtype to the weights -> same-dtype MXU path (no promotion).
    xp_flat = x_patch.reshape(M, DP).astype(compute_dtype)
    xs = x_seq.astype(compute_dtype)

    act_bytes = jnp.dtype(compute_dtype).itemsize
    out_bytes = jnp.dtype(out_dtype).itemsize
    w_bytes = act_bytes

    def footprint(tm):
        return (2 * tm * DP * act_bytes          # xp block, double-buffered
                + 2 * tm * L * D * act_bytes     # xs block, double-buffered
                + 2 * tm * T_pad * out_bytes     # out block, double-buffered
                + (DP + D) * T_pad * w_bytes     # weights, single-buffered
                + T_pad * 4)                     # bias

    # Row tile: sublane-packed, >= 2 grid steps when possible (v7x megacore +
    # pipelining), capped at 512, shrunk to fit a v7x-safe VMEM budget.
    sub = 8 if act_bytes >= 4 else 16
    if M < 2 * sub:
        TM = M
    else:
        TM = min(512, _round_up(pl.cdiv(M, 2), sub))
    budget = 44 << 20
    while TM > sub and footprint(TM) > budget:
        TM = max(sub, _round_up(TM // 2, sub))
    # TODO(synk): add a K-reduction grid axis with an f32 accumulator scratch
    # (P3) if the resident weights (DP+D)*T_pad alone ever exceed the budget.

    vmem_limit = min(max(int(footprint(TM) * 1.3) + (4 << 20), 32 << 20), 60 << 20)
    grid = (pl.cdiv(M, TM),)

    out_padded = pl.pallas_call(
        adaptive_head_kernel,
        out_shape=jax.ShapeDtypeStruct((M, T_pad), out_dtype),
        grid_spec=pltpu.PrefetchScalarGridSpec(
            num_scalar_prefetch=0,
            grid=grid,
            in_specs=[
                pl.BlockSpec((TM, DP), lambda i: (i, 0)),
                pl.BlockSpec((TM, L, D), lambda i: (i, 0, 0)),
                # Grid-invariant weights/bias: fetched once, single-buffered.
                pl.BlockSpec((DP, T_pad), lambda i: (0, 0),
                             pipeline_mode=pl.Buffered(1)),
                pl.BlockSpec((D, T_pad), lambda i: (0, 0),
                             pipeline_mode=pl.Buffered(1)),
                pl.BlockSpec((1, T_pad), lambda i: (0, 0),
                             pipeline_mode=pl.Buffered(1)),
            ],
            out_specs=pl.BlockSpec((TM, T_pad), lambda i: (i, 0)),
        ),
        compiler_params=pltpu.CompilerParams(
            dimension_semantics=("parallel",),
            vmem_limit_bytes=vmem_limit),
    )(xp_flat, xs, folded["w1"], folded["w2"], folded["b"])

    # Lane-padded slab -> (B, n_vars, T). Consumers that tolerate a 128-padded
    # last dim can take out_padded directly and skip this slice.
    return out_padded[:, :T].reshape(batch_size, n_vars, T)


# --------------------------------------------------------------------------- #
# Init + pure-JAX reference (mirrors the PyTorch module exactly)
# --------------------------------------------------------------------------- #
def init_params(key, d_model, patch_num, target_length):
    """PyTorch-Linear-style init: uniform(-1/sqrt(fan_in), 1/sqrt(fan_in))."""
    T = target_length
    DP = d_model * patch_num
    ks = jax.random.split(key, 6)

    def lin(kw, kb, fan_in, fan_out):
        bound = 1.0 / math.sqrt(fan_in)
        w = jax.random.uniform(kw, (fan_out, fan_in), jnp.float32, -bound, bound)
        b = jax.random.uniform(kb, (fan_out,), jnp.float32, -bound, bound)
        return w, b

    wp, bp = lin(ks[0], ks[1], DP, T)
    ws, bs = lin(ks[2], ks[3], d_model, T)
    wf, bf = lin(ks[4], ks[5], 2 * T, T)
    return {"wp": wp, "bp": bp, "ws": ws, "bs": bs, "wf": wf, "bf": bf}


def reference_forward(x_patch, x_seq, params, *, d_model, patch_num,
                      target_length, n_vars):
    M = x_patch.shape[0]
    B = M // n_vars
    xp = x_patch.reshape(B, n_vars, patch_num * d_model)
    patch_out = xp @ params["wp"].T + params["bp"]
    xs = x_seq.reshape(B, n_vars, -1, d_model).mean(axis=2)
    seq_out = xs @ params["ws"].T + params["bs"]
    fused = (jnp.concatenate([patch_out, seq_out], axis=-1) @ params["wf"].T
             + params["bf"])
    return fused


if __name__ == "__main__":
    # Small shapes consistent with the module.
    d_model = 32
    patch_num = 8
    target_length = 16
    n_vars = 4
    batch = 2
    seq_len = 8

    key = jax.random.PRNGKey(0)
    k_xp, k_xs, k_params = jax.random.split(key, 3)

    x_patch = jax.random.normal(k_xp, (batch * n_vars, patch_num, d_model),
                                jnp.float32)
    x_seq = jax.random.normal(k_xs, (batch * n_vars, seq_len, d_model),
                              jnp.float32)
    params = init_params(k_params, d_model, patch_num, target_length)

    ref = reference_forward(
        x_patch, x_seq, params,
        d_model=d_model, patch_num=patch_num,
        target_length=target_length, n_vars=n_vars)

    # f32 path (exact up to f32 reassociation)
    folded_f32 = fold_params(params, d_model=d_model, patch_num=patch_num,
                             target_length=target_length,
                             compute_dtype=jnp.float32)
    out_f32 = adaptive_head_forward(x_patch, x_seq, folded_f32, n_vars=n_vars)
    out_f32 = jax.block_until_ready(out_f32)
    assert out_f32.shape == (batch, n_vars, target_length)
    assert jnp.allclose(out_f32, ref, atol=1e-4, rtol=1e-4), "f32 mismatch"

    # bf16 path (half the weight/activation DMA, native bf16 MXU path)
    folded_bf16 = fold_params(params, d_model=d_model, patch_num=patch_num,
                              target_length=target_length,
                              compute_dtype=jnp.bfloat16)
    out_bf16 = adaptive_head_forward(x_patch.astype(jnp.bfloat16),
                                     x_seq.astype(jnp.bfloat16),
                                     folded_bf16, n_vars=n_vars)
    out_bf16 = jax.block_until_ready(out_bf16)
    assert out_bf16.shape == (batch, n_vars, target_length)
    assert jnp.allclose(out_bf16.astype(jnp.float32), ref,
                        atol=5e-2, rtol=5e-2), "bf16 mismatch"

    print("KERNEL_OK")
</pallas_src>

<mosaic_0001>
module attributes {stable_mosaic.version = 11 : i64} {
  func.func @adaptive_head_kernel(%arg0: i32, %arg1: memref<8x256xf32, #tpu.memory_space<vmem>>, %arg2: memref<8x8x32xf32, #tpu.memory_space<vmem>>, %arg3: memref<256x128xf32, #tpu.memory_space<vmem>>, %arg4: memref<32x128xf32, #tpu.memory_space<vmem>>, %arg5: memref<1x128xf32, #tpu.memory_space<vmem>>, %arg6: memref<8x128xf32, #tpu.memory_space<vmem>>) attributes {dimension_semantics = [#tpu.dimension_semantics<parallel>], iteration_bounds = array<i64: 1>, scalar_prefetch = 0 : i64, scratch_operands = 0 : i64, tpu.core_type = #tpu.core_type<tc>, window_params = [{transform_indices = @transform_0, window_bounds = array<i64: 8, 256>}, {transform_indices = @transform_1, window_bounds = array<i64: 8, 8, 32>}, {pipeline_mode = #tpu.pipeline_mode<synchronous>, transform_indices = @transform_2, window_bounds = array<i64: 256, 128>}, {pipeline_mode = #tpu.pipeline_mode<synchronous>, transform_indices = @transform_3, window_bounds = array<i64: 32, 128>}, {pipeline_mode = #tpu.pipeline_mode<synchronous>, transform_indices = @transform_4, window_bounds = array<i64: 1, 128>}, {transform_indices = @transform_5, window_bounds = array<i64: 8, 128>}]} {
    %c0 = arith.constant 0 : index
    %c0_0 = arith.constant 0 : index
    %c0_1 = arith.constant 0 : index
    %0 = vector.load %arg2[%c0, %c0_0, %c0_1] : memref<8x8x32xf32, #tpu.memory_space<vmem>>, vector<8x8x32xf32>
    %1 = vector.extract_strided_slice %0 {offsets = [0, 0, 0], sizes = [8, 1, 32], strides = [1, 1, 1]} : vector<8x8x32xf32> to vector<8x1x32xf32>
    %2 = vector.shape_cast %1 : vector<8x1x32xf32> to vector<8x32xf32>
    %3 = vector.extract_strided_slice %0 {offsets = [0, 1, 0], sizes = [8, 1, 32], strides = [1, 1, 1]} : vector<8x8x32xf32> to vector<8x1x32xf32>
    %4 = vector.shape_cast %3 : vector<8x1x32xf32> to vector<8x32xf32>
    %5 = arith.addf %2, %4 : vector<8x32xf32>
    %6 = vector.extract_strided_slice %0 {offsets = [0, 2, 0], sizes = [8, 1, 32], strides = [1, 1, 1]} : vector<8x8x32xf32> to vector<8x1x32xf32>
    %7 = vector.shape_cast %6 : vector<8x1x32xf32> to vector<8x32xf32>
    %8 = arith.addf %5, %7 : vector<8x32xf32>
    %9 = vector.extract_strided_slice %0 {offsets = [0, 3, 0], sizes = [8, 1, 32], strides = [1, 1, 1]} : vector<8x8x32xf32> to vector<8x1x32xf32>
    %10 = vector.shape_cast %9 : vector<8x1x32xf32> to vector<8x32xf32>
    %11 = arith.addf %8, %10 : vector<8x32xf32>
    %12 = vector.extract_strided_slice %0 {offsets = [0, 4, 0], sizes = [8, 1, 32], strides = [1, 1, 1]} : vector<8x8x32xf32> to vector<8x1x32xf32>
    %13 = vector.shape_cast %12 : vector<8x1x32xf32> to vector<8x32xf32>
    %14 = arith.addf %11, %13 : vector<8x32xf32>
    %15 = vector.extract_strided_slice %0 {offsets = [0, 5, 0], sizes = [8, 1, 32], strides = [1, 1, 1]} : vector<8x8x32xf32> to vector<8x1x32xf32>
    %16 = vector.shape_cast %15 : vector<8x1x32xf32> to vector<8x32xf32>
    %17 = arith.addf %14, %16 : vector<8x32xf32>
    %18 = vector.extract_strided_slice %0 {offsets = [0, 6, 0], sizes = [8, 1, 32], strides = [1, 1, 1]} : vector<8x8x32xf32> to vector<8x1x32xf32>
    %19 = vector.shape_cast %18 : vector<8x1x32xf32> to vector<8x32xf32>
    %20 = arith.addf %17, %19 : vector<8x32xf32>
    %21 = vector.extract_strided_slice %0 {offsets = [0, 7, 0], sizes = [8, 1, 32], strides = [1, 1, 1]} : vector<8x8x32xf32> to vector<8x1x32xf32>
    %22 = vector.shape_cast %21 : vector<8x1x32xf32> to vector<8x32xf32>
    %23 = arith.addf %20, %22 : vector<8x32xf32>
    %cst = arith.constant 1.250000e-01 : f32
    %24 = vector.broadcast %cst : f32 to vector<8x32xf32>
    %25 = arith.mulf %23, %24 : vector<8x32xf32>
    %c0_2 = arith.constant 0 : index
    %c0_3 = arith.constant 0 : index
    %26 = vector.load %arg1[%c0_2, %c0_3] : memref<8x256xf32, #tpu.memory_space<vmem>>, vector<8x256xf32>
    %c0_4 = arith.constant 0 : index
    %c0_5 = arith.constant 0 : index
    %27 = vector.load %arg3[%c0_4, %c0_5] : memref<256x128xf32, #tpu.memory_space<vmem>>, vector<256x128xf32>
    %cst_6 = arith.constant dense<0.000000e+00> : vector<8x128xf32>
    %28 = tpu.matmul %26, %27, %cst_6 {dimension_numbers = #tpu.dot_dimension_numbers<[1], [0], [0], [1], [0, 0, 1, 1], [], []>} : vector<8x256xf32>, vector<256x128xf32>, vector<8x128xf32> -> vector<8x128xf32>
    %c0_7 = arith.constant 0 : index
    %c0_8 = arith.constant 0 : index
    %29 = vector.load %arg4[%c0_7, %c0_8] : memref<32x128xf32, #tpu.memory_space<vmem>>, vector<32x128xf32>
    %cst_9 = arith.constant dense<0.000000e+00> : vector<8x128xf32>
    %30 = tpu.matmul %25, %29, %cst_9 {dimension_numbers = #tpu.dot_dimension_numbers<[1], [0], [0], [1], [0, 0, 1, 1], [], []>} : vector<8x32xf32>, vector<32x128xf32>, vector<8x128xf32> -> vector<8x128xf32>
    %31 = arith.addf %28, %30 : vector<8x128xf32>
    %c0_10 = arith.constant 0 : index
    %c0_11 = arith.constant 0 : index
    %32 = vector.load %arg5[%c0_10, %c0_11] : memref<1x128xf32, #tpu.memory_space<vmem>>, vector<1x128xf32>
    %33 = vector.broadcast %32 : vector<1x128xf32> to vector<8x128xf32>
    %34 = arith.addf %31, %33 : vector<8x128xf32>
    %c0_12 = arith.constant 0 : index
    %c0_13 = arith.constant 0 : index
    %35 = vector.load %arg6[%c0_12, %c0_13] : memref<8x128xf32, #tpu.memory_space<vmem>>, vector<8x128xf32>
    tpu.vector_store %arg6[%c0_12, %c0_13], %34 {strides = array<i32>} : memref<8x128xf32, #tpu.memory_space<vmem>>, vector<8x128xf32>,
    return
  }
  func.func @transform_0(%arg0: i32) -> (i32, i32) {
    %c0_i32 = arith.constant 0 : i32
    %c0_i32_0 = arith.constant 0 : i32
    return %arg0, %c0_i32 : i32, i32
  }
  func.func @transform_1(%arg0: i32) -> (i32, i32, i32) {
    %c0_i32 = arith.constant 0 : i32
    %c0_i32_0 = arith.constant 0 : i32
    %c0_i32_1 = arith.constant 0 : i32
    return %arg0, %c0_i32, %c0_i32_0 : i32, i32, i32
  }
  func.func @transform_2(%arg0: i32) -> (i32, i32) {
    %c0_i32 = arith.constant 0 : i32
    %c0_i32_0 = arith.constant 0 : i32
    %c0_i32_1 = arith.constant 0 : i32
    return %c0_i32, %c0_i32_0 : i32, i32
  }
  func.func @transform_3(%arg0: i32) -> (i32, i32) {
    %c0_i32 = arith.constant 0 : i32
    %c0_i32_0 = arith.constant 0 : i32
    %c0_i32_1 = arith.constant 0 : i32
    return %c0_i32, %c0_i32_0 : i32, i32
  }
  func.func @transform_4(%arg0: i32) -> (i32, i32) {
    %c0_i32 = arith.constant 0 : i32
    %c0_i32_0 = arith.constant 0 : i32
    %c0_i32_1 = arith.constant 0 : i32
    return %c0_i32, %c0_i32_0 : i32, i32
  }
  func.func @transform_5(%arg0: i32) -> (i32, i32) {
    %c0_i32 = arith.constant 0 : i32
    %c0_i32_0 = arith.constant 0 : i32
    return %arg0, %c0_i32 : i32, i32
  }
}

</mosaic_0001>

<llo_original>
// kernel: tpu_custom_call.1
$region0: #{tpu_custom_call.1}
  #allocation0 [shape = 'u32[]', space=smem, size = 0x4, offset = 0x4, fixed_abs, tag = 'smem constant byte address 0x4 - core index']
  #allocation1 [shape = 'u32[144,128]{1,0:T(1,128)}', space=vmem, size = 0x12000, scoped, tag = 'internal scratch']
  %s0 = inlined_call_operand.hbm [shape: f32[8,256], index: 0, kind: input, shape index: {}]
  %s1 = inlined_call_operand.hbm [shape: f32[8,8,32], index: 1, kind: input, shape index: {}]
  %s2 = inlined_call_operand.hbm [shape: f32[256,128], index: 2, kind: input, shape index: {}]
  %s3 = inlined_call_operand.hbm [shape: f32[32,128], index: 3, kind: input, shape index: {}]
  %s4 = inlined_call_operand.vmem [shape: f32[1,128], index: 4, kind: input, shape index: {}]
  %s5 = inlined_call_operand.hbm [shape: f32[8,128], index: 5, kind: output, shape index: {}]
  %s6 = sld [smem:[#allocation0]]
  $region46: #{tpu_custom_call.1} parent=0
    _
  %s8 = ssub.s32 1, %s6
  %s9 = scalar_select 0, %s8, %s6
  $region1: #{tpu_custom_call.1} parent=0
    #allocation2 [shape = 'u8[8192]{0}', space=vmem, size = 0x2000, scoped, tag = 'input window, operand 0, single buffered']
    #allocation3 [shape = 's32[1]{0}', space=sflag, size = 0x4, scoped, tag = 'scoped memory for tpu_custom_call.1']
    #allocation4 [shape = 's32[1]{0}', space=sflag, size = 0x4, scoped, tag = 'scoped memory for tpu_custom_call.1']
    #allocation5 [shape = 'u8[32768]{0}', space=vmem, size = 0x8000, scoped, tag = 'input window, operand 1, single buffered']
    #allocation6 [shape = 's32[1]{0}', space=sflag, size = 0x4, scoped, tag = 'scoped memory for tpu_custom_call.1']
    #allocation7 [shape = 'u8[131072]{0}', space=vmem, size = 0x20000, scoped, tag = 'input window, operand 2, single buffered']
    #allocation8 [shape = 'u8[16384]{0}', space=vmem, size = 0x4000, scoped, tag = 'input window, operand 3, single buffered']
    #allocation9 [shape = 's32[1]{0}', space=sflag, size = 0x4, scoped, tag = 'scoped memory for tpu_custom_call.1']
    #allocation10 [shape = 'u8[4096]{0}', space=vmem, size = 0x1000, scoped, tag = 'output window, operand 0, single buffered']
    %10 = vsyncpa [#allocation3], 0
    %11 = vsyncpa [#allocation6], 0
    %12 = vsyncpa [#allocation9], 0
    %13 = vsyncpa [#allocation4], 0
    // Predicated region
    $region2: #{tpu_custom_call.1} parent=1 // pred_check
      _
    $region3: #{tpu_custom_call.1} parent=1 // pred_check_branch
      %15 = sbr.rel (0) target = $region5
    $region4: #{tpu_custom_call.1} parent=1 // pred_region
      %s17 = ssub.s32 256, 256
      %18 = vsyncadd [#allocation3], %s17
      %s20 = sshll.u32 [#allocation2], 4
      %s21 = int_to_ptr.vmem [resolvable:$true] %s20
      %23 = dma.hbm_to_vmem [thread:$0]  %s0, 256, %s21, [#allocation3]
    $region5: #{tpu_custom_call.1} parent=1 // pred_fallthru
      _
    // Predicated region
    $region6: #{tpu_custom_call.1} parent=1 // pred_check
      _
    $region7: #{tpu_custom_call.1} parent=1 // pred_check_branch
      %25 = sbr.rel (0) target = $region9
    $region8: #{tpu_custom_call.1} parent=1 // pred_region
      %s27 = ssub.s32 1024, 1024
      %28 = vsyncadd [#allocation6], %s27
      %s29 = sshll.u32 [#allocation5], 4
      %s30 = int_to_ptr.vmem [resolvable:$true] %s29
      %35 = dma.hbm_to_vmem [thread:$0]  %s1, 1024, %s30, [#allocation6], 128, 128, 8
    $region9: #{tpu_custom_call.1} parent=1 // pred_fallthru
      _
    // Predicated region
    $region10: #{tpu_custom_call.1} parent=1 // pred_check
      _
    $region11: #{tpu_custom_call.1} parent=1 // pred_check_branch
      %37 = sbr.rel (0) target = $region13
    $region12: #{tpu_custom_call.1} parent=1 // pred_region
      %s39 = ssub.s32 4096, 4096
      %40 = vsyncadd [#allocation6], %s39
      %s41 = sshll.u32 [#allocation7], 4
      %s42 = int_to_ptr.vmem [resolvable:$true] %s41
      %47 = dma.hbm_to_vmem [thread:$0]  %s2, 4096, %s42, [#allocation6], 128, 128, 8
    $region13: #{tpu_custom_call.1} parent=1 // pred_fallthru
      _
    // Predicated region
    $region14: #{tpu_custom_call.1} parent=1 // pred_check
      _
    $region15: #{tpu_custom_call.1} parent=1 // pred_check_branch
      %49 = sbr.rel (0) target = $region17
    $region16: #{tpu_custom_call.1} parent=1 // pred_region
      %s51 = ssub.s32 512, 512
      %52 = vsyncadd [#allocation9], %s51
      %s53 = sshll.u32 [#allocation8], 4
      %s54 = int_to_ptr.vmem [resolvable:$true] %s53
      %59 = dma.hbm_to_vmem [thread:$0]  %s3, 512, %s54, [#allocation9], 128, 128, 8
    $region17: #{tpu_custom_call.1} parent=1 // pred_fallthru
      _
    // Predicated region
    $region18: #{tpu_custom_call.1} parent=1 // pred_check
      _
    $region19: #{tpu_custom_call.1} parent=1 // pred_check_branch
      %61 = sbr.rel (0) target = $region21
    $region20: #{tpu_custom_call.1} parent=1 // pred_region
      _
    $region21: #{tpu_custom_call.1} parent=1 // pred_fallthru
      _
    // Predicated region
    $region22: #{tpu_custom_call.1} parent=1 // pred_check
      _
    $region23: #{tpu_custom_call.1} parent=1 // pred_check_branch
      %63 = sbr.rel (0) target = $region25
    $region24: #{tpu_custom_call.1} parent=1 // pred_region
      %64 = dma.done [#allocation3], 256
    $region25: #{tpu_custom_call.1} parent=1 // pred_fallthru
      _
    // Predicated region
    $region26: #{tpu_custom_call.1} parent=1 // pred_check
      _
    $region27: #{tpu_custom_call.1} parent=1 // pred_check_branch
      %66 = sbr.rel (0) target = $region29
    $region28: #{tpu_custom_call.1} parent=1 // pred_region
      %67 = dma.done [#allocation6], 1024
    $region29: #{tpu_custom_call.1} parent=1 // pred_fallthru
      _
    // Predicated region
    $region30: #{tpu_custom_call.1} parent=1 // pred_check
      _
    $region31: #{tpu_custom_call.1} parent=1 // pred_check_branch
      %69 = sbr.rel (0) target = $region33
    $region32: #{tpu_custom_call.1} parent=1 // pred_region
      %70 = dma.done [#allocation6], 4096
    $region33: #{tpu_custom_call.1} parent=1 // pred_fallthru
      _
    // Predicated region
    $region34: #{tpu_custom_call.1} parent=1 // pred_check
      _
    $region35: #{tpu_custom_call.1} parent=1 // pred_check_branch
      %72 = sbr.rel (0) target = $region37
    $region36: #{tpu_custom_call.1} parent=1 // pred_region
      %73 = dma.done [#allocation9], 512
    $region37: #{tpu_custom_call.1} parent=1 // pred_fallthru
      _
    %v74 = vld [vmem:[#allocation5] sm:$0xff]
    %v75 = vld [vmem:[#allocation5 + $0x8] sm:$0xff]
    %v76 = vld [vmem:[#allocation5 + $0x10] sm:$0xff]
    %v77 = vld [vmem:[#allocation5 + $0x18] sm:$0xff]
    %v78 = vld [vmem:[#allocation5 + $0x20] sm:$0xff]
    %v79 = vld [vmem:[#allocation5 + $0x28] sm:$0xff]
    %v80 = vld [vmem:[#allocation5 + $0x30] sm:$0xff]
    %v81 = vld [vmem:[#allocation5 + $0x38] sm:$0xff]
    %v90 = vrot.slane %v74, 1
    %v91 = vrot.slane %v75, 1
    %v92 = vrot.slane %v76, 1
    %v93 = vrot.slane %v77, 1
    %v94 = vrot.slane %v78, 1
    %v95 = vrot.slane %v79, 1
    %v96 = vrot.slane %v80, 1
    %v97 = vrot.slane %v81, 1
    %v106 = vadd.f32 %v74, %v90
    %v107 = vadd.f32 %v75, %v91
    %v108 = vadd.f32 %v76, %v92
    %v109 = vadd.f32 %v77, %v93
    %v110 = vadd.f32 %v78, %v94
    %v111 = vadd.f32 %v79, %v95
    %v112 = vadd.f32 %v80, %v96
    %v113 = vadd.f32 %v81, %v97
    %v114 = vrot.slane %v74, 2
    %v115 = vrot.slane %v75, 2
    %v116 = vrot.slane %v76, 2
    %v117 = vrot.slane %v77, 2
    %v118 = vrot.slane %v78, 2
    %v119 = vrot.slane %v79, 2
    %v120 = vrot.slane %v80, 2
    %v121 = vrot.slane %v81, 2
    %v130 = vadd.f32 %v106, %v114
    %v131 = vadd.f32 %v107, %v115
    %v132 = vadd.f32 %v108, %v116
    %v133 = vadd.f32 %v109, %v117
    %v134 = vadd.f32 %v110, %v118
    %v135 = vadd.f32 %v111, %v119
    %v136 = vadd.f32 %v112, %v120
    %v137 = vadd.f32 %v113, %v121
    %v138 = vrot.slane %v74, 3
    %v139 = vrot.slane %v75, 3
    %v140 = vrot.slane %v76, 3
    %v141 = vrot.slane %v77, 3
    %v142 = vrot.slane %v78, 3
    %v143 = vrot.slane %v79, 3
    %v144 = vrot.slane %v80, 3
    %v145 = vrot.slane %v81, 3
    %v154 = vadd.f32 %v130, %v138
    %v155 = vadd.f32 %v131, %v139
    %v156 = vadd.f32 %v132, %v140
    %v157 = vadd.f32 %v133, %v141
    %v158 = vadd.f32 %v134, %v142
    %v159 = vadd.f32 %v135, %v143
    %v160 = vadd.f32 %v136, %v144
    %v161 = vadd.f32 %v137, %v145
    %v162 = vrot.slane %v74, 4
    %v163 = vrot.slane %v75, 4
    %v164 = vrot.slane %v76, 4
    %v165 = vrot.slane %v77, 4
    %v166 = vrot.slane %v78, 4
    %v167 = vrot.slane %v79, 4
    %v168 = vrot.slane %v80, 4
    %v169 = vrot.slane %v81, 4
    %v178 = vadd.f32 %v154, %v162
    %v179 = vadd.f32 %v155, %v163
    %v180 = vadd.f32 %v156, %v164
    %v181 = vadd.f32 %v157, %v165
    %v182 = vadd.f32 %v158, %v166
    %v183 = vadd.f32 %v159, %v167
    %v184 = vadd.f32 %v160, %v168
    %v185 = vadd.f32 %v161, %v169
    %v186 = vrot.slane %v74, 5
    %v187 = vrot.slane %v75, 5
    %v188 = vrot.slane %v76, 5
    %v189 = vrot.slane %v77, 5
    %v190 = vrot.slane %v78, 5
    %v191 = vrot.slane %v79, 5
    %v192 = vrot.slane %v80, 5
    %v193 = vrot.slane %v81, 5
    %v202 = vadd.f32 %v178, %v186
    %v203 = vadd.f32 %v179, %v187
    %v204 = vadd.f32 %v180, %v188
    %v205 = vadd.f32 %v181, %v189
    %v206 = vadd.f32 %v182, %v190
    %v207 = vadd.f32 %v183, %v191
    %v208 = vadd.f32 %v184, %v192
    %v209 = vadd.f32 %v185, %v193
    %v210 = vrot.slane %v74, 6
    %v211 = vrot.slane %v75, 6
    %v212 = vrot.slane %v76, 6
    %v213 = vrot.slane %v77, 6
    %v214 = vrot.slane %v78, 6
    %v215 = vrot.slane %v79, 6
    %v216 = vrot.slane %v80, 6
    %v217 = vrot.slane %v81, 6
    %v226 = vadd.f32 %v202, %v210
    %v227 = vadd.f32 %v203, %v211
    %v228 = vadd.f32 %v204, %v212
    %v229 = vadd.f32 %v205, %v213
    %v230 = vadd.f32 %v206, %v214
    %v231 = vadd.f32 %v207, %v215
    %v232 = vadd.f32 %v208, %v216
    %v233 = vadd.f32 %v209, %v217
    %v234 = vrot.slane %v74, 7
    %v235 = vrot.slane %v75, 7
    %v236 = vrot.slane %v76, 7
    %v237 = vrot.slane %v77, 7
    %v238 = vrot.slane %v78, 7
    %v239 = vrot.slane %v79, 7
    %v240 = vrot.slane %v80, 7
    %v241 = vrot.slane %v81, 7
    %v250 = vadd.f32 %v226, %v234
    %v251 = vadd.f32 %v227, %v235
    %v252 = vadd.f32 %v228, %v236
    %v253 = vadd.f32 %v229, %v237
    %v254 = vadd.f32 %v230, %v238
    %v255 = vadd.f32 %v231, %v239
    %v256 = vadd.f32 %v232, %v240
    %v257 = vadd.f32 %v233, %v241
    %v258 = vmul.f32 %v250, 0.125
    %v259 = vmul.f32 %v251, 0.125
    %v260 = vmul.f32 %v252, 0.125
    %v261 = vmul.f32 %v253, 0.125
    %v262 = vmul.f32 %v254, 0.125
    %v263 = vmul.f32 %v255, 0.125
    %v264 = vmul.f32 %v256, 0.125
    %v265 = vmul.f32 %v257, 0.125
    %v266 = vld [vmem:[#allocation2] sm:$0xff]
    %v267 = vld [vmem:[#allocation2 + $0x8] sm:$0xff]
    %v268 = vld [vmem:[#allocation7] sm:$0xff]
    %v269 = vld [vmem:[#allocation7 + $0x8] sm:$0xff]
    %v270 = vld [vmem:[#allocation7 + $0x10] sm:$0xff]
    %v271 = vld [vmem:[#allocation7 + $0x18] sm:$0xff]
    %v272 = vld [vmem:[#allocation7 + $0x20] sm:$0xff]
    %v273 = vld [vmem:[#allocation7 + $0x28] sm:$0xff]
    %v274 = vld [vmem:[#allocation7 + $0x30] sm:$0xff]
    %v275 = vld [vmem:[#allocation7 + $0x38] sm:$0xff]
    %v276 = vld [vmem:[#allocation7 + $0x40] sm:$0xff]
    %v277 = vld [vmem:[#allocation7 + $0x48] sm:$0xff]
    %v278 = vld [vmem:[#allocation7 + $0x50] sm:$0xff]
    %v279 = vld [vmem:[#allocation7 + $0x58] sm:$0xff]
    %v280 = vld [vmem:[#allocation7 + $0x60] sm:$0xff]
    %v281 = vld [vmem:[#allocation7 + $0x68] sm:$0xff]
    %v282 = vld [vmem:[#allocation7 + $0x70] sm:$0xff]
    %v283 = vld [vmem:[#allocation7 + $0x78] sm:$0xff]
    %v284 = vld [vmem:[#allocation7 + $0x80] sm:$0xff]
    %v285 = vld [vmem:[#allocation7 + $0x88] sm:$0xff]
    %v286 = vld [vmem:[#allocation7 + $0x90] sm:$0xff]
    %v287 = vld [vmem:[#allocation7 + $0x98] sm:$0xff]
    %v288 = vld [vmem:[#allocation7 + $0xa0] sm:$0xff]
    %v289 = vld [vmem:[#allocation7 + $0xa8] sm:$0xff]
    %v290 = vld [vmem:[#allocation7 + $0xb0] sm:$0xff]
    %v291 = vld [vmem:[#allocation7 + $0xb8] sm:$0xff]
    %v292 = vld [vmem:[#allocation7 + $0xc0] sm:$0xff]
    %v293 = vld [vmem:[#allocation7 + $0xc8] sm:$0xff]
    %v294 = vld [vmem:[#allocation7 + $0xd0] sm:$0xff]
    %v295 = vld [vmem:[#allocation7 + $0xd8] sm:$0xff]
    %v296 = vld [vmem:[#allocation7 + $0xe0] sm:$0xff]
    %v297 = vld [vmem:[#allocation7 + $0xe8] sm:$0xff]
    %v298 = vld [vmem:[#allocation7 + $0xf0] sm:$0xff]
    %v299 = vld [vmem:[#allocation7 + $0xf8] sm:$0xff]
    %v300 = vld [vmem:[#allocation8] sm:$0xff]
    %v301 = vld [vmem:[#allocation8 + $0x8] sm:$0xff]
    %v302 = vld [vmem:[#allocation8 + $0x10] sm:$0xff]
    %v303 = vld [vmem:[#allocation8 + $0x18] sm:$0xff]
    %v312 = vrot.slane %v259, 7
    %vm313 = vcmask 1041409
    %v314 = vsel %vm313, %v312, %v258
    %v315 = vrot.slane %v260, 6
    %vm316 = vcmask 1042434
    %v317 = vsel %vm316, %v315, %v314
    %v318 = vrot.slane %v261, 5
    %vm319 = vcmask 1043459
    %v320 = vsel %vm319, %v318, %v317
    %v321 = vrot.slane %v262, 4
    %vm322 = vcmask 1044484
    %v323 = vsel %vm322, %v321, %v320
    %v324 = vrot.slane %v263, 3
    %vm325 = vcmask 1045509
    %v326 = vsel %vm325, %v324, %v323
    %v327 = vrot.slane %v264, 2
    %vm328 = vcmask 1046534
    %v329 = vsel %vm328, %v327, %v326
    %v330 = vrot.slane %v265, 1
    %vm331 = vcmask 1047559
    %v332 = vsel %vm331, %v330, %v329
    %vm333 = vcmask 261120
    %v334 = vsel %vm333, %v332, 0
    %336 = vmatprep.subr.mxu0 0.0
    %337 = vmatpush1.msra.mxu0 %v300
    %338 = vmatprep.subr.mxu0 0.0
    %339 = vmatpush1.msra.mxu0 %v301
    %340 = vmatprep.subr.mxu0 0.0
    %341 = vmatpush1.msra.mxu0 %v302
    %342 = vmatprep.subr.mxu0 0.0
    %343 = vmatpush1.msra.mxu0 %v303
    %344 = vmatprep.subr.mxu0 0.0
    %345 = vmatpush1.msra.mxu0 0.0
    %346 = vmatprep.subr.mxu0 0.0
    %347 = vmatpush1.msra.mxu0 0.0
    %348 = vmatprep.subr.mxu0 0.0
    %349 = vmatpush1.msra.mxu0 0.0
    %350 = vmatprep.subr.mxu0 0.0
    %351 = vmatpush1.msra.mxu0 0.0
    %352 = vmatprep.subr.mxu0 0.0
    %353 = vmatpush1.msra.mxu0 0.0
    %354 = vmatprep.subr.mxu0 0.0
    %355 = vmatpush1.msra.mxu0 0.0
    %356 = vmatprep.subr.mxu0 0.0
    %357 = vmatpush1.msra.mxu0 0.0
    %358 = vmatprep.subr.mxu0 0.0
    %359 = vmatpush1.msra.mxu0 0.0
    %360 = vmatprep.subr.mxu0 0.0
    %361 = vmatpush1.msra.mxu0 0.0
    %362 = vmatprep.subr.mxu0 0.0
    %363 = vmatpush1.msra.mxu0 0.0
    %364 = vmatprep.subr.mxu0 0.0
    %365 = vmatpush1.msra.mxu0 0.0
    %366 = vmatprep.subr.mxu0 0.0
    %367 = vmatpush1.msra.mxu0 0.0
    %368 = vmatprep.subr.mxu0 0.0
    %369 = vmatpush1.msra.mxu0 0.0
    %370 = vmatprep.subr.mxu0 0.0
    %371 = vmatpush1.msra.mxu0 0.0
    %372 = vmatprep.subr.mxu0 0.0
    %373 = vmatpush1.msra.mxu0 0.0
    %374 = vmatprep.subr.mxu0 0.0
    %375 = vmatpush1.msra.mxu0 0.0
    %376 = vmatprep.subr.mxu0 0.0
    %377 = vmatpush1.msra.mxu0 0.0
    %378 = vmatprep.subr.mxu0 0.0
    %379 = vmatpush1.msra.mxu0 0.0
    %380 = vmatprep.subr.mxu0 0.0
    %381 = vmatpush1.msra.mxu0 0.0
    %382 = vmatprep.subr.mxu0 0.0
    %383 = vmatpush1.msra.mxu0 0.0
    %384 = vmatprep.subr.mxu0 0.0
    %385 = vmatpush1.msra.mxu0 0.0
    %386 = vmatprep.subr.mxu0 0.0
    %387 = vmatpush1.msra.mxu0 0.0
    %388 = vmatprep.subr.mxu0 0.0
    %389 = vmatpush1.msra.mxu0 0.0
    %390 = vmatprep.subr.mxu0 0.0
    %391 = vmatpush1.msra.mxu0 0.0
    %392 = vmatprep.subr.mxu0 0.0
    %393 = vmatpush1.msra.mxu0 0.0
    %394 = vmatprep.subr.mxu0 0.0
    %395 = vmatpush1.msra.mxu0 0.0
    %396 = vmatprep.subr.mxu0 0.0
    %397 = vmatpush1.msra.mxu0 0.0
    %398 = vmatprep.subr.mxu0 0.0
    %399 = vmatpush1.msra.mxu0 0.0
    %400 = vmatprep.mubr.f32.mxu0 0.0
    %401 = vmatmul.mubr.f32.gmra.mrb[0].mxu0 %v334
    %v402 = vpop.f32.mrb[0].mxu0
    %v403 = vadd.f32 0.0, %v402
    %v404 = vpop.f32.mrb[0].mxu0
    %405 = vdwg.mxu0
    %406 = vmatprep.subr.mxu0 0.0
    %407 = vmatpush1.msra.mxu0 %v268
    %408 = vmatprep.subr.mxu0 0.0
    %409 = vmatpush1.msra.mxu0 %v269
    %410 = vmatprep.subr.mxu0 0.0
    %411 = vmatpush1.msra.mxu0 %v270
    %412 = vmatprep.subr.mxu0 0.0
    %413 = vmatpush1.msra.mxu0 %v271
    %414 = vmatprep.subr.mxu0 0.0
    %415 = vmatpush1.msra.mxu0 %v272
    %416 = vmatprep.subr.mxu0 0.0
    %417 = vmatpush1.msra.mxu0 %v273
    %418 = vmatprep.subr.mxu0 0.0
    %419 = vmatpush1.msra.mxu0 %v274
    %420 = vmatprep.subr.mxu0 0.0
    %421 = vmatpush1.msra.mxu0 %v275
    %422 = vmatprep.subr.mxu0 0.0
    %423 = vmatpush1.msra.mxu0 %v276
    %424 = vmatprep.subr.mxu0 0.0
    %425 = vmatpush1.msra.mxu0 %v277
    %426 = vmatprep.subr.mxu0 0.0
    %427 = vmatpush1.msra.mxu0 %v278
    %428 = vmatprep.subr.mxu0 0.0
    %429 = vmatpush1.msra.mxu0 %v279
    %430 = vmatprep.subr.mxu0 0.0
    %431 = vmatpush1.msra.mxu0 %v280
    %432 = vmatprep.subr.mxu0 0.0
    %433 = vmatpush1.msra.mxu0 %v281
    %434 = vmatprep.subr.mxu0 0.0
    %435 = vmatpush1.msra.mxu0 %v282
    %436 = vmatprep.subr.mxu0 0.0
    %437 = vmatpush1.msra.mxu0 %v283
    %438 = vmatprep.subr.mxu0 0.0
    %439 = vmatpush1.msra.mxu0 %v284
    %440 = vmatprep.subr.mxu0 0.0
    %441 = vmatpush1.msra.mxu0 %v285
    %442 = vmatprep.subr.mxu0 0.0
    %443 = vmatpush1.msra.mxu0 %v286
    %444 = vmatprep.subr.mxu0 0.0
    %445 = vmatpush1.msra.mxu0 %v287
    %446 = vmatprep.subr.mxu0 0.0
    %447 = vmatpush1.msra.mxu0 %v288
    %448 = vmatprep.subr.mxu0 0.0
    %449 = vmatpush1.msra.mxu0 %v289
    %450 = vmatprep.subr.mxu0 0.0
    %451 = vmatpush1.msra.mxu0 %v290
    %452 = vmatprep.subr.mxu0 0.0
    %453 = vmatpush1.msra.mxu0 %v291
    %454 = vmatprep.subr.mxu0 0.0
    %455 = vmatpush1.msra.mxu0 %v292
    %456 = vmatprep.subr.mxu0 0.0
    %457 = vmatpush1.msra.mxu0 %v293
    %458 = vmatprep.subr.mxu0 0.0
    %459 = vmatpush1.msra.mxu0 %v294
    %460 = vmatprep.subr.mxu0 0.0
    %461 = vmatpush1.msra.mxu0 %v295
    %462 = vmatprep.subr.mxu0 0.0
    %463 = vmatpush1.msra.mxu0 %v296
    %464 = vmatprep.subr.mxu0 0.0
    %465 = vmatpush1.msra.mxu0 %v297
    %466 = vmatprep.subr.mxu0 0.0
    %467 = vmatpush1.msra.mxu0 %v298
    %468 = vmatprep.subr.mxu0 0.0
    %469 = vmatpush1.msra.mxu0 %v299
    %470 = vmatprep.mubr.f32.mxu0 %v267
    %471 = vmatmul.mubr.f32.gmra.mrb[0].mxu0 %v266
    %v472 = vpop.f32.mrb[0].mxu0
    %v473 = vadd.f32 %v403, %v472
    %v474 = vpop.f32.mrb[0].mxu0
    %475 = vdwg.mxu0
    %v476 = vld [vmem:[%s4] sm:$0x1]
    %v478 = vlaneseq
    %v479 = vshrl.u32 %v478, 7
    %v480 = vsub.s32 0, %v479
    %v481 = vrot.slane %v476, %v480
    %v483 = vadd.f32 %v473, %v481
    %484 = vst [vmem:[#allocation10] sm:$0xff] %v483
    // Predicated region
    $region38: #{tpu_custom_call.1} parent=1 // pred_check
      _
    $region39: #{tpu_custom_call.1} parent=1 // pred_check_branch
      %486 = sbr.rel (0) target = $region41
    $region40: #{tpu_custom_call.1} parent=1 // pred_region
      %s488 = ssub.s32 128, 128
      %489 = vsyncadd [#allocation4], %s488
      %s491 = sshll.u32 [#allocation10], 4
      %s492 = int_to_ptr.vmem [resolvable:$true] %s491
      %494 = dma.vmem_to_hbm [thread:$0]  %s492, 128, %s5, [#allocation4]
    $region41: #{tpu_custom_call.1} parent=1 // pred_fallthru
      _
    // Predicated region
    $region42: #{tpu_custom_call.1} parent=1 // pred_check
      _
    $region43: #{tpu_custom_call.1} parent=1 // pred_check_branch
      %496 = sbr.rel (0) target = $region45
    $region44: #{tpu_custom_call.1} parent=1 // pred_region
      %497 = dma.done [#allocation4], 128
    $region45: #{tpu_custom_call.1} parent=1 // pred_fallthru
      _
    %498 = vsyncpa [#allocation3], 1
    %499 = vsyncpa [#allocation6], 1
    %500 = vsyncpa [#allocation9], 1
    %501 = vsyncpa [#allocation4], 1

</llo_original>
